<compile_context>
chip_gen: v7x
topology: tpu7x:2x2x1
jax: 0.10.0
libtpu: 0.0.40
codegen_flags: <defaults>
</compile_context>

<pallas_src>
import functools

import jax
import jax.numpy as jnp
from jax import lax
from jax.experimental import pallas as pl
from jax.experimental.pallas import tpu as pltpu

NUM_GROUPS = 32
EPS = 1e-6


def _pick_tile(n):
    """Largest lane-friendly HW tile (multiple of 128) that still gives >=2 grid steps."""
    for t in (512, 256, 128):
        if n % t == 0 and n // t >= 2:
            return t
    return n


# ----------------------------------------------------------------------------
# Kernel 1: GroupNorm statistics -> per-(batch, channel) affine:  y = x*a + b
# grid = (B, HW/THW); HW axis is a reduction ("arbitrary") accumulated in VMEM.
# ----------------------------------------------------------------------------
def _gn_stats_kernel(x_ref, ohcg_ref, ohgc_ref, gamma_ref, beta_ref,
                     a_ref, b_ref, s1_ref, s2_ref, *, inv_n, eps):
    hw_i = pl.program_id(1)

    @pl.when(hw_i == 0)
    def _():
        s1_ref[...] = jnp.zeros_like(s1_ref)
        s2_ref[...] = jnp.zeros_like(s2_ref)

    x = x_ref[0]                                         # (THW, C) f32
    csum = jnp.sum(x, axis=0, keepdims=True)             # (1, C)
    csq = jnp.sum(x * x, axis=0, keepdims=True)          # (1, C)
    s1_ref[...] += jnp.dot(csum, ohcg_ref[...], preferred_element_type=jnp.float32)
    s2_ref[...] += jnp.dot(csq, ohcg_ref[...], preferred_element_type=jnp.float32)

    @pl.when(hw_i == pl.num_programs(1) - 1)
    def _():
        mean_g = s1_ref[...] * inv_n                     # (1, G)  (mul, not div)
        var_g = jnp.maximum(s2_ref[...] * inv_n - mean_g * mean_g, 0.0)
        inv_g = lax.rsqrt(var_g + eps)
        mean_c = jnp.dot(mean_g, ohgc_ref[...], preferred_element_type=jnp.float32)
        inv_c = jnp.dot(inv_g, ohgc_ref[...], preferred_element_type=jnp.float32)
        scale = inv_c * gamma_ref[...]
        a_ref[0] = scale
        b_ref[0] = beta_ref[...] - mean_c * scale


# ----------------------------------------------------------------------------
# Kernel 2: apply GroupNorm affine + Q/K/V 1x1-conv projections (bf16),
# K is written pre-transposed (C, HW) so the flash loop needs no relayout.
# grid = (B, HW/THW), both axes parallel.
# ----------------------------------------------------------------------------
def _qkv_kernel(x_ref, a_ref, b_ref, wq_ref, bq_ref, wk_ref, bk_ref,
                wv_ref, bv_ref, q_ref, kt_ref, v_ref):
    y = (x_ref[0] * a_ref[0] + b_ref[0]).astype(jnp.bfloat16)     # (THW, C)
    q = jnp.dot(y, wq_ref[...], preferred_element_type=jnp.float32) + bq_ref[...]
    k = jnp.dot(y, wk_ref[...], preferred_element_type=jnp.float32) + bk_ref[...]
    v = jnp.dot(y, wv_ref[...], preferred_element_type=jnp.float32) + bv_ref[...]
    q_ref[0] = q.astype(jnp.bfloat16)
    kt_ref[0] = jnp.transpose(k).astype(jnp.bfloat16)             # (C, THW)
    v_ref[0] = v.astype(jnp.bfloat16)


# ----------------------------------------------------------------------------
# Kernel 3: flash-style attention over key tiles + fused proj_out + residual.
# grid = (B, HW/TQ, HW/TK); key axis "arbitrary" with fp32 online-softmax state
# in VMEM scratch; output block stays resident across the key axis.
# ----------------------------------------------------------------------------
def _flash_attn_kernel(q_ref, kt_ref, v_ref, x_ref, wo_ref, bo_ref, o_ref,
                       m_ref, l_ref, acc_ref, *, scale):
    k_i = pl.program_id(2)

    @pl.when(k_i == 0)
    def _():
        m_ref[...] = jnp.full_like(m_ref, -jnp.inf)
        l_ref[...] = jnp.zeros_like(l_ref)
        acc_ref[...] = jnp.zeros_like(acc_ref)

    # logits[i, j] = <q_i, k_j> * c^-0.5  (K already transposed -> plain matmul)
    s = jnp.dot(q_ref[0], kt_ref[0], preferred_element_type=jnp.float32) * scale
    m_prev = m_ref[...]
    m_new = jnp.maximum(m_prev, jnp.max(s, axis=-1, keepdims=True))
    alpha = jnp.exp(m_prev - m_new)
    p = jnp.exp(s - m_new)
    l_ref[...] = alpha * l_ref[...] + jnp.sum(p, axis=-1, keepdims=True)
    acc_ref[...] = alpha * acc_ref[...] + jnp.dot(
        p.astype(jnp.bfloat16), v_ref[0], preferred_element_type=jnp.float32)
    m_ref[...] = m_new

    @pl.when(k_i == pl.num_programs(2) - 1)
    def _():
        out = acc_ref[...] * pl.reciprocal(l_ref[...], approx=True)
        proj = jnp.dot(out.astype(jnp.bfloat16), wo_ref[...],
                       preferred_element_type=jnp.float32) + bo_ref[...]
        o_ref[0] = x_ref[0] + proj                                  # residual


# ----------------------------------------------------------------------------
# Wrapper
# ----------------------------------------------------------------------------
def attn_block(p, x_nchw):
    """AttnBlock forward: x + proj_out(attn(GroupNorm(x))) — NCHW in, NCHW out."""
    x = jnp.transpose(x_nchw, (0, 2, 3, 1)).astype(jnp.float32)     # NHWC
    b, h, w, c = x.shape
    hw = h * w
    xf = x.reshape(b, hw, c)

    thw = _pick_tile(hw)
    n_hw = hw // thw

    g = NUM_GROUPS
    cpg = c // g
    # one-hot group matrices, built once on host and passed as tiny constant inputs
    oh_cg = (jnp.arange(c)[:, None] // cpg
             == jnp.arange(g)[None, :]).astype(jnp.float32)          # (C, G)
    oh_gc = jnp.transpose(oh_cg)                                     # (G, C)
    gamma = p['norm']['gamma'].reshape(1, c).astype(jnp.float32)
    beta = p['norm']['beta'].reshape(1, c).astype(jnp.float32)

    seq_spec = pl.BlockSpec((1, thw, c), lambda bi, hi: (bi, hi, 0))
    cvec_spec = pl.BlockSpec((1, c), lambda bi, hi: (0, 0))
    aff_spec = pl.BlockSpec((1, 1, c), lambda bi, hi: (bi, 0, 0))

    # --- GroupNorm statistics --------------------------------------------------
    a_c, b_c = pl.pallas_call(
        functools.partial(_gn_stats_kernel, inv_n=1.0 / float(hw * cpg), eps=EPS),
        out_shape=(jax.ShapeDtypeStruct((b, 1, c), jnp.float32),
                   jax.ShapeDtypeStruct((b, 1, c), jnp.float32)),
        grid=(b, n_hw),
        in_specs=[seq_spec,
                  pl.BlockSpec((c, g), lambda bi, hi: (0, 0)),
                  pl.BlockSpec((g, c), lambda bi, hi: (0, 0)),
                  cvec_spec, cvec_spec],
        out_specs=[aff_spec, aff_spec],
        scratch_shapes=[pltpu.VMEM((1, g), jnp.float32),
                        pltpu.VMEM((1, g), jnp.float32)],
        compiler_params=pltpu.CompilerParams(
            dimension_semantics=("parallel", "arbitrary")),
    )(xf, oh_cg, oh_gc, gamma, beta)

    # --- normalize + Q/K/V projection (bf16, K pre-transposed) -----------------
    def w_bf16(name):
        return p[name]['w'].reshape(c, c).astype(jnp.bfloat16)

    def bias_f32(name):
        return p[name]['b'].reshape(1, c).astype(jnp.float32)

    wmat_spec = pl.BlockSpec((c, c), lambda bi, hi: (0, 0))
    q_bf, kt_bf, v_bf = pl.pallas_call(
        _qkv_kernel,
        out_shape=(jax.ShapeDtypeStruct((b, hw, c), jnp.bfloat16),
                   jax.ShapeDtypeStruct((b, c, hw), jnp.bfloat16),
                   jax.ShapeDtypeStruct((b, hw, c), jnp.bfloat16)),
        grid=(b, n_hw),
        in_specs=[seq_spec, aff_spec, aff_spec,
                  wmat_spec, cvec_spec, wmat_spec, cvec_spec,
                  wmat_spec, cvec_spec],
        out_specs=[pl.BlockSpec((1, thw, c), lambda bi, hi: (bi, hi, 0)),
                   pl.BlockSpec((1, c, thw), lambda bi, hi: (bi, 0, hi)),
                   pl.BlockSpec((1, thw, c), lambda bi, hi: (bi, hi, 0))],
        compiler_params=pltpu.CompilerParams(
            dimension_semantics=("parallel", "parallel")),
    )(xf, a_c, b_c, w_bf16('q'), bias_f32('q'), w_bf16('k'), bias_f32('k'),
      w_bf16('v'), bias_f32('v'))

    # --- flash attention + proj_out + residual ---------------------------------
    out = pl.pallas_call(
        functools.partial(_flash_attn_kernel, scale=float(c) ** -0.5),
        out_shape=jax.ShapeDtypeStruct((b, hw, c), jnp.float32),
        grid=(b, n_hw, n_hw),
        in_specs=[pl.BlockSpec((1, thw, c), lambda bi, qi, ki: (bi, qi, 0)),
                  pl.BlockSpec((1, c, thw), lambda bi, qi, ki: (bi, 0, ki)),
                  pl.BlockSpec((1, thw, c), lambda bi, qi, ki: (bi, ki, 0)),
                  pl.BlockSpec((1, thw, c), lambda bi, qi, ki: (bi, qi, 0)),
                  pl.BlockSpec((c, c), lambda bi, qi, ki: (0, 0)),
                  pl.BlockSpec((1, c), lambda bi, qi, ki: (0, 0))],
        out_specs=pl.BlockSpec((1, thw, c), lambda bi, qi, ki: (bi, qi, 0)),
        scratch_shapes=[pltpu.VMEM((thw, 1), jnp.float32),
                        pltpu.VMEM((thw, 1), jnp.float32),
                        pltpu.VMEM((thw, c), jnp.float32)],
        compiler_params=pltpu.CompilerParams(
            dimension_semantics=("parallel", "parallel", "arbitrary")),
    )(q_bf, kt_bf, v_bf, xf, w_bf16('proj_out'), bias_f32('proj_out'))

    return jnp.transpose(out.reshape(b, h, w, c), (0, 3, 1, 2))


# ----------------------------------------------------------------------------
# Pure-JAX fp32 reference (for a loose numerical sanity check)
# ----------------------------------------------------------------------------
def attn_block_ref(p, x_nchw):
    x = jnp.transpose(x_nchw, (0, 2, 3, 1)).astype(jnp.float32)
    b, h, w, c = x.shape
    hw = h * w
    xf = x.reshape(b, hw, c)
    g = NUM_GROUPS
    xg = xf.reshape(b, hw, g, c // g)
    mean = xg.mean(axis=(1, 3), keepdims=True)
    var = xg.var(axis=(1, 3), keepdims=True)
    y = ((xg - mean) / jnp.sqrt(var + EPS)).reshape(b, hw, c)
    y = y * p['norm']['gamma'] + p['norm']['beta']
    q = y @ p['q']['w'] + p['q']['b']
    k = y @ p['k']['w'] + p['k']['b']
    v = y @ p['v']['w'] + p['v']['b']
    logits = jnp.einsum('bqc,bkc->bqk', q, k) * (float(c) ** -0.5)
    attn = jax.nn.softmax(logits, axis=-1)
    out = jnp.einsum('bqk,bkc->bqc', attn, v)
    proj = out @ p['proj_out']['w'] + p['proj_out']['b']
    o = xf + proj
    return jnp.transpose(o.reshape(b, h, w, c), (0, 3, 1, 2))


# ----------------------------------------------------------------------------
# Deterministic synthetic parameters (no checkpoint loading)
# ----------------------------------------------------------------------------
def init_attn_block(key, c):
    keys = jax.random.split(key, 10)

    def conv1x1(kw, kb):
        return {'w': jax.random.normal(kw, (c, c), jnp.float32) * (c ** -0.5),
                'b': jax.random.normal(kb, (c,), jnp.float32) * 0.01}

    return {
        'norm': {'gamma': 1.0 + 0.1 * jax.random.normal(keys[8], (c,), jnp.float32),
                 'beta': 0.05 * jax.random.normal(keys[9], (c,), jnp.float32)},
        'q': conv1x1(keys[0], keys[1]),
        'k': conv1x1(keys[2], keys[3]),
        'v': conv1x1(keys[4], keys[5]),
        'proj_out': conv1x1(keys[6], keys[7]),
    }


# ----------------------------------------------------------------------------
if __name__ == "__main__":
    B, C, H, W = 2, 128, 16, 16          # C must be a multiple of 32 (GroupNorm)

    root = jax.random.PRNGKey(0)
    k_params, k_x = jax.random.split(root)
    params = init_attn_block(k_params, C)
    x = jax.random.normal(k_x, (B, C, H, W), jnp.float32)

    out = attn_block(params, x)
    out = jax.block_until_ready(out)

    assert out.shape == (B, C, H, W), out.shape
    assert bool(jnp.all(jnp.isfinite(out)))

    ref = attn_block_ref(params, x)
    err = float(jnp.max(jnp.abs(out - ref)))
    assert err < 0.25, f"max abs err vs fp32 reference: {err}"
    print("KERNEL_OK")
</pallas_src>

<mosaic_0001>
module attributes {stable_mosaic.version = 11 : i64} {
  func.func @_gn_stats_kernel(%arg0: i32, %arg1: i32, %arg2: memref<1x128x128xf32, #tpu.memory_space<vmem>>, %arg3: memref<128x32xf32, #tpu.memory_space<vmem>>, %arg4: memref<32x128xf32, #tpu.memory_space<vmem>>, %arg5: memref<1x128xf32, #tpu.memory_space<vmem>>, %arg6: memref<1x128xf32, #tpu.memory_space<vmem>>, %arg7: memref<1x1x128xf32, #tpu.memory_space<vmem>>, %arg8: memref<1x1x128xf32, #tpu.memory_space<vmem>>, %arg9: memref<1x32xf32, #tpu.memory_space<vmem>>, %arg10: memref<1x32xf32, #tpu.memory_space<vmem>>) attributes {dimension_semantics = [#tpu.dimension_semantics<parallel>, #tpu.dimension_semantics<arbitrary>], iteration_bounds = array<i64: 2, 2>, scalar_prefetch = 0 : i64, scratch_operands = 2 : i64, tpu.core_type = #tpu.core_type<tc>, window_params = [{transform_indices = @transform_0, window_bounds = array<i64: 1, 128, 128>}, {pipeline_mode = #tpu.pipeline_mode<synchronous>, transform_indices = @transform_1, window_bounds = array<i64: 128, 32>}, {pipeline_mode = #tpu.pipeline_mode<synchronous>, transform_indices = @transform_2, window_bounds = array<i64: 32, 128>}, {pipeline_mode = #tpu.pipeline_mode<synchronous>, transform_indices = @transform_3, window_bounds = array<i64: 1, 128>}, {pipeline_mode = #tpu.pipeline_mode<synchronous>, transform_indices = @transform_4, window_bounds = array<i64: 1, 128>}, {transform_indices = @transform_5, window_bounds = array<i64: 1, 1, 128>}, {transform_indices = @transform_6, window_bounds = array<i64: 1, 1, 128>}]} {
    %c0_i32 = arith.constant 0 : i32
    %0 = arith.cmpi eq, %arg1, %c0_i32 : i32
    %1 = arith.extui %0 : i1 to i32
    %c0_i32_0 = arith.constant 0 : i32
    %2 = arith.cmpi ne, %1, %c0_i32_0 : i32
    scf.if %2 {
      %cst_19 = arith.constant 0.000000e+00 : f32
      %23 = vector.broadcast %cst_19 : f32 to vector<1x32xf32>
      %c0_20 = arith.constant 0 : index
      %c0_21 = arith.constant 0 : index
      %24 = vector.load %arg9[%c0_20, %c0_21] : memref<1x32xf32, #tpu.memory_space<vmem>>, vector<1x32xf32>
      tpu.vector_store %arg9[%c0_20, %c0_21], %23 {strides = array<i32>} : memref<1x32xf32, #tpu.memory_space<vmem>>, vector<1x32xf32>,
      %cst_22 = arith.constant 0.000000e+00 : f32
      %25 = vector.broadcast %cst_22 : f32 to vector<1x32xf32>
      %c0_23 = arith.constant 0 : index
      %c0_24 = arith.constant 0 : index
      %26 = vector.load %arg10[%c0_23, %c0_24] : memref<1x32xf32, #tpu.memory_space<vmem>>, vector<1x32xf32>
      tpu.vector_store %arg10[%c0_23, %c0_24], %25 {strides = array<i32>} : memref<1x32xf32, #tpu.memory_space<vmem>>, vector<1x32xf32>,
    } else {
    }
    %c0 = arith.constant 0 : index
    %c0_1 = arith.constant 0 : index
    %c0_2 = arith.constant 0 : index
    %3 = vector.load %arg2[%c0, %c0_1, %c0_2] : memref<1x128x128xf32, #tpu.memory_space<vmem>>, vector<1x128x128xf32>
    %4 = vector.shape_cast %3 : vector<1x128x128xf32> to vector<128x128xf32>
    %cst = arith.constant dense<0.000000e+00> : vector<128xf32>
    %5 = vector.multi_reduction <add>, %4, %cst [0] : vector<128x128xf32> to vector<128xf32>
    %6 = vector.shape_cast %5 : vector<128xf32> to vector<1x128xf32>
    %7 = arith.mulf %4, %4 : vector<128x128xf32>
    %cst_3 = arith.constant dense<0.000000e+00> : vector<128xf32>
    %8 = vector.multi_reduction <add>, %7, %cst_3 [0] : vector<128x128xf32> to vector<128xf32>
    %9 = vector.shape_cast %8 : vector<128xf32> to vector<1x128xf32>
    %c0_4 = arith.constant 0 : index
    %c0_5 = arith.constant 0 : index
    %10 = vector.load %arg9[%c0_4, %c0_5] : memref<1x32xf32, #tpu.memory_space<vmem>>, vector<1x32xf32>
    %c0_6 = arith.constant 0 : index
    %c0_7 = arith.constant 0 : index
    %11 = vector.load %arg3[%c0_6, %c0_7] : memref<128x32xf32, #tpu.memory_space<vmem>>, vector<128x32xf32>
    %cst_8 = arith.constant dense<0.000000e+00> : vector<1x32xf32>
    %12 = tpu.matmul %6, %11, %cst_8 {dimension_numbers = #tpu.dot_dimension_numbers<[1], [0], [0], [1], [0, 0, 1, 1], [], []>} : vector<1x128xf32>, vector<128x32xf32>, vector<1x32xf32> -> vector<1x32xf32>
    %13 = arith.addf %10, %12 : vector<1x32xf32>
    %c0_9 = arith.constant 0 : index
    %c0_10 = arith.constant 0 : index
    %14 = vector.load %arg9[%c0_9, %c0_10] : memref<1x32xf32, #tpu.memory_space<vmem>>, vector<1x32xf32>
    tpu.vector_store %arg9[%c0_9, %c0_10], %13 {strides = array<i32>} : memref<1x32xf32, #tpu.memory_space<vmem>>, vector<1x32xf32>,
    %c0_11 = arith.constant 0 : index
    %c0_12 = arith.constant 0 : index
    %15 = vector.load %arg10[%c0_11, %c0_12] : memref<1x32xf32, #tpu.memory_space<vmem>>, vector<1x32xf32>
    %c0_13 = arith.constant 0 : index
    %c0_14 = arith.constant 0 : index
    %16 = vector.load %arg3[%c0_13, %c0_14] : memref<128x32xf32, #tpu.memory_space<vmem>>, vector<128x32xf32>
    %cst_15 = arith.constant dense<0.000000e+00> : vector<1x32xf32>
    %17 = tpu.matmul %9, %16, %cst_15 {dimension_numbers = #tpu.dot_dimension_numbers<[1], [0], [0], [1], [0, 0, 1, 1], [], []>} : vector<1x128xf32>, vector<128x32xf32>, vector<1x32xf32> -> vector<1x32xf32>
    %18 = arith.addf %15, %17 : vector<1x32xf32>
    %c0_16 = arith.constant 0 : index
    %c0_17 = arith.constant 0 : index
    %19 = vector.load %arg10[%c0_16, %c0_17] : memref<1x32xf32, #tpu.memory_space<vmem>>, vector<1x32xf32>
    tpu.vector_store %arg10[%c0_16, %c0_17], %18 {strides = array<i32>} : memref<1x32xf32, #tpu.memory_space<vmem>>, vector<1x32xf32>,
    %c1_i32 = arith.constant 1 : i32
    %20 = arith.cmpi eq, %arg1, %c1_i32 : i32
    %21 = arith.extui %20 : i1 to i32
    %c0_i32_18 = arith.constant 0 : i32
    %22 = arith.cmpi ne, %21, %c0_i32_18 : i32
    scf.if %22 {
      %c0_19 = arith.constant 0 : index
      %c0_20 = arith.constant 0 : index
      %23 = vector.load %arg9[%c0_19, %c0_20] : memref<1x32xf32, #tpu.memory_space<vmem>>, vector<1x32xf32>
      %cst_21 = arith.constant 9.765625E-4 : f32
      %24 = vector.broadcast %cst_21 : f32 to vector<1x32xf32>
      %25 = arith.mulf %23, %24 : vector<1x32xf32>
      %c0_22 = arith.constant 0 : index
      %c0_23 = arith.constant 0 : index
      %26 = vector.load %arg10[%c0_22, %c0_23] : memref<1x32xf32, #tpu.memory_space<vmem>>, vector<1x32xf32>
      %cst_24 = arith.constant 9.765625E-4 : f32
      %27 = vector.broadcast %cst_24 : f32 to vector<1x32xf32>
      %28 = arith.mulf %26, %27 : vector<1x32xf32>
      %29 = arith.mulf %25, %25 : vector<1x32xf32>
      %30 = arith.subf %28, %29 : vector<1x32xf32>
      %cst_25 = arith.constant 0.000000e+00 : f32
      %31 = vector.broadcast %cst_25 : f32 to vector<1x32xf32>
      %32 = arith.maximumf %30, %31 : vector<1x32xf32>
      %cst_26 = arith.constant 9.99999997E-7 : f32
      %33 = vector.broadcast %cst_26 : f32 to vector<1x32xf32>
      %34 = arith.addf %32, %33 : vector<1x32xf32>
      %35 = math.rsqrt %34 : vector<1x32xf32>
      %c0_27 = arith.constant 0 : index
      %c0_28 = arith.constant 0 : index
      %36 = vector.load %arg4[%c0_27, %c0_28] : memref<32x128xf32, #tpu.memory_space<vmem>>, vector<32x128xf32>
      %cst_29 = arith.constant dense<0.000000e+00> : vector<1x128xf32>
      %37 = tpu.matmul %25, %36, %cst_29 {dimension_numbers = #tpu.dot_dimension_numbers<[1], [0], [0], [1], [0, 0, 1, 1], [], []>} : vector<1x32xf32>, vector<32x128xf32>, vector<1x128xf32> -> vector<1x128xf32>
      %c0_30 = arith.constant 0 : index
      %c0_31 = arith.constant 0 : index
      %38 = vector.load %arg4[%c0_30, %c0_31] : memref<32x128xf32, #tpu.memory_space<vmem>>, vector<32x128xf32>
      %cst_32 = arith.constant dense<0.000000e+00> : vector<1x128xf32>
      %39 = tpu.matmul %35, %38, %cst_32 {dimension_numbers = #tpu.dot_dimension_numbers<[1], [0], [0], [1], [0, 0, 1, 1], [], []>} : vector<1x32xf32>, vector<32x128xf32>, vector<1x128xf32> -> vector<1x128xf32>
      %c0_33 = arith.constant 0 : index
      %c0_34 = arith.constant 0 : index
      %40 = vector.load %arg5[%c0_33, %c0_34] : memref<1x128xf32, #tpu.memory_space<vmem>>, vector<1x128xf32>
      %41 = arith.mulf %39, %40 : vector<1x128xf32>
      %c0_35 = arith.constant 0 : index
      %c0_36 = arith.constant 0 : index
      %c0_37 = arith.constant 0 : index
      %42 = vector.load %arg7[%c0_35, %c0_36, %c0_37] : memref<1x1x128xf32, #tpu.memory_space<vmem>>, vector<1x1x128xf32>
      %43 = vector.shape_cast %42 : vector<1x1x128xf32> to vector<1x128xf32>
      %44 = vector.shape_cast %41 : vector<1x128xf32> to vector<1x1x128xf32>
      tpu.vector_store %arg7[%c0_35, %c0_36, %c0_37], %44 {strides = array<i32>} : memref<1x1x128xf32, #tpu.memory_space<vmem>>, vector<1x1x128xf32>,
      %c0_38 = arith.constant 0 : index
      %c0_39 = arith.constant 0 : index
      %45 = vector.load %arg6[%c0_38, %c0_39] : memref<1x128xf32, #tpu.memory_space<vmem>>, vector<1x128xf32>
      %46 = arith.mulf %37, %41 : vector<1x128xf32>
      %47 = arith.subf %45, %46 : vector<1x128xf32>
      %c0_40 = arith.constant 0 : index
      %c0_41 = arith.constant 0 : index
      %c0_42 = arith.constant 0 : index
      %48 = vector.load %arg8[%c0_40, %c0_41, %c0_42] : memref<1x1x128xf32, #tpu.memory_space<vmem>>, vector<1x1x128xf32>
      %49 = vector.shape_cast %48 : vector<1x1x128xf32> to vector<1x128xf32>
      %50 = vector.shape_cast %47 : vector<1x128xf32> to vector<1x1x128xf32>
      tpu.vector_store %arg8[%c0_40, %c0_41, %c0_42], %50 {strides = array<i32>} : memref<1x1x128xf32, #tpu.memory_space<vmem>>, vector<1x1x128xf32>,
    } else {
    }
    return
  }
  func.func @transform_0(%arg0: i32, %arg1: i32) -> (i32, i32, i32) {
    %c0_i32 = arith.constant 0 : i32
    %c0_i32_0 = arith.constant 0 : i32
    return %arg0, %arg1, %c0_i32 : i32, i32, i32
  }
  func.func @transform_1(%arg0: i32, %arg1: i32) -> (i32, i32) {
    %c0_i32 = arith.constant 0 : i32
    %c0_i32_0 = arith.constant 0 : i32
    %c0_i32_1 = arith.constant 0 : i32
    return %c0_i32, %c0_i32_0 : i32, i32
  }
  func.func @transform_2(%arg0: i32, %arg1: i32) -> (i32, i32) {
    %c0_i32 = arith.constant 0 : i32
    %c0_i32_0 = arith.constant 0 : i32
    %c0_i32_1 = arith.constant 0 : i32
    return %c0_i32, %c0_i32_0 : i32, i32
  }
  func.func @transform_3(%arg0: i32, %arg1: i32) -> (i32, i32) {
    %c0_i32 = arith.constant 0 : i32
    %c0_i32_0 = arith.constant 0 : i32
    %c0_i32_1 = arith.constant 0 : i32
    return %c0_i32, %c0_i32_0 : i32, i32
  }
  func.func @transform_4(%arg0: i32, %arg1: i32) -> (i32, i32) {
    %c0_i32 = arith.constant 0 : i32
    %c0_i32_0 = arith.constant 0 : i32
    %c0_i32_1 = arith.constant 0 : i32
    return %c0_i32, %c0_i32_0 : i32, i32
  }
  func.func @transform_5(%arg0: i32, %arg1: i32) -> (i32, i32, i32) {
    %c0_i32 = arith.constant 0 : i32
    %c0_i32_0 = arith.constant 0 : i32
    %c0_i32_1 = arith.constant 0 : i32
    return %arg0, %c0_i32, %c0_i32_0 : i32, i32, i32
  }
  func.func @transform_6(%arg0: i32, %arg1: i32) -> (i32, i32, i32) {
    %c0_i32 = arith.constant 0 : i32
    %c0_i32_0 = arith.constant 0 : i32
    %c0_i32_1 = arith.constant 0 : i32
    return %arg0, %c0_i32, %c0_i32_0 : i32, i32, i32
  }
}

</mosaic_0001>

<llo_original>
// kernel: tpu_custom_call.1
$region0: #{tpu_custom_call.1}
  #allocation0 [shape = 'u32[]', space=smem, size = 0x4, offset = 0x4, fixed_abs, tag = 'smem constant byte address 0x4 - core index']
  #allocation1 [shape = 'u32[144,128]{1,0:T(1,128)}', space=vmem, size = 0x12000, scoped, tag = 'internal scratch']
  #allocation2 [shape = 'f32[1,32]{1,0:T(1,128)}', space=vmem, size = 0x200, scoped, tag = 'scratch operand']
  #allocation3 [shape = 'f32[1,32]{1,0:T(1,128)}', space=vmem, size = 0x200, scoped, tag = 'scratch operand']
  %s0 = inlined_call_operand.hbm [shape: f32[2,256,128], index: 0, kind: input, shape index: {}]
  %s1 = inlined_call_operand.vmem [shape: f32[128,32], index: 1, kind: input, shape index: {}]
  %s2 = inlined_call_operand.vmem [shape: f32[32,128], index: 2, kind: input, shape index: {}]
  %s3 = inlined_call_operand.vmem [shape: f32[1,128], index: 3, kind: input, shape index: {}]
  %s4 = inlined_call_operand.vmem [shape: f32[1,128], index: 4, kind: input, shape index: {}]
  %s5 = inlined_call_operand.hbm [shape: f32[2,1,128], index: 5, kind: output, shape index: {0}]
  %s6 = inlined_call_operand.hbm [shape: f32[2,1,128], index: 6, kind: output, shape index: {1}]
  %7 = xla_tuple %s5, %s6
  %s8 = sld [smem:[#allocation0]]
  $region73: #{tpu_custom_call.1} parent=0
    _
  %s10 = ssub.s32 1, %s8
  %s11 = scalar_select 0, %s10, %s8
  $region1: #{tpu_custom_call.1} parent=0
    #allocation4 [shape = 'u8[131072]{0}', space=vmem, size = 0x20000, scoped, tag = 'input window, operand 0']
    #allocation5 [shape = 's32[2]{0}', space=sflag, size = 0x8, scoped, tag = 'scoped memory for tpu_custom_call.1']
    #allocation6 [shape = 's32[2]{0}', space=sflag, size = 0x8, scoped, tag = 'scoped memory for tpu_custom_call.1']
    #allocation7 [shape = 'u8[1024]{0}', space=vmem, size = 0x400, scoped, tag = 'output window, operand 0']
    #allocation8 [shape = 'u8[1024]{0}', space=vmem, size = 0x400, scoped, tag = 'output window, operand 1']
    #allocation9 [shape = 's32[2]{0}', space=sflag, size = 0x8, scoped, tag = 'scoped memory for tpu_custom_call.1']
    %12 = vsyncpa [#allocation5], 0
    %s13 = scalar_lea.sflag [#allocation5], 1
    %14 = vsyncpa %s13, 0
    %15 = vsyncpa [#allocation6], 0
    %s16 = scalar_lea.sflag [#allocation6], 1
    %17 = vsyncpa %s16, 0
    %18 = vsyncpa [#allocation9], 0
    %s19 = scalar_lea.sflag [#allocation9], 1
    %20 = vsyncpa %s19, 0
    loop: start=0, step=1, limit=6
    $region2: #{tpu_custom_call.1} parent=1 // loop_pre_header
      _
    $region3: #{tpu_custom_call.1} parent=1 // loop_header
      %s22 = sphi 0, %s26
      %p23 = scmp.ge.s32.totalorder %s22, 6
      %s29 = sphi 0, %s41
      %s30 = sphi 0, %s37
      %s31 = sphi 0, %s29
      %s32 = sphi 0, %s30
      %s33 = sphi 0, %s31
      %s34 = sphi 0, %s32
      %s46 = sphi 0, %s48
      %s49 = sphi 0, %s46
      %s50 = sphi 0, %s49
      %s66 = sphi 0, %s50
      %s70 = sphi 0, %s70
      %s72 = sphi 0, %s70
      %s73 = sphi 0, %s72
      %s87 = sphi 0, %s73
      %s91 = sphi 0, %s91
      %s93 = sphi 0, %s91
      %s94 = sphi 0, %s93
      %s108 = sphi 0, %s94
      %s112 = sphi 0, %s112
      %s114 = sphi 0, %s112
      %s115 = sphi 0, %s114
      %s129 = sphi 0, %s115
      %s133 = sphi 0, %s133
      %s135 = sphi 0, %s133
      %s136 = sphi 0, %s135
      %s150 = sphi 0, %s136
      %s156 = sphi 0, %s158
      %s159 = sphi 0, %s156
      %s160 = sphi 0, %s159
      %s176 = sphi 0, %s160
      %s182 = sphi 0, %s184
      %s185 = sphi 0, %s182
      %s186 = sphi 0, %s185
      %s202 = sphi 0, %s186
    $region4: #{tpu_custom_call.1} parent=1 // loop_header_branch
      %25 = sbr.rel (%p23) target = $region8
    $region5: #{tpu_custom_call.1} parent=1 // loop_body
      %s27 = ssub.s32 %s22, 1
      %s28 = ssub.s32 %s22, 2
      %s35 = sadd.s32 1, %s30
      %p36 = scmp.ge.s32.totalorder %s35, 2
      %s37 = scalar_select %p36, 0, %s35
      %s38 = sadd.s32 1, %s29
      %s39 = scalar_select %p36, %s38, %s29
      %p40 = scmp.ge.s32.totalorder %s39, 2
      %s41 = scalar_select %p40, 0, %s39
      %s42 = ssub.s32 %s29, %s41
      %s43 = ssub.s32 %s30, %s37
      %s44 = sor.u32 %s42, %s43
      %p45 = scmp.eq.s32.totalorder %s44, 0
      %s47 = sadd.s32 %s46, 1
      %s48 = scalar_select %p45, %s46, %s47
      %p51 = pneg %p45
      %p52 = scmp.eq.s32.totalorder %s22, 3
      %p53 = por %p51, %p52
      %p54 = scmp.ne.s32.totalorder %s46, %s49
      %p55 = scmp.eq.s32.totalorder %s22, 0
      %p56 = por %p54, %p55
      %p57 = scmp.ne.s32.totalorder %s46, %s49
      %p58 = scmp.eq.s32.totalorder %s27, 3
      %p59 = por %p57, %p58
      %p60 = scmp.ne.s32.totalorder %s49, %s50
      %p61 = scmp.eq.s32.totalorder %s27, 0
      %p62 = por %p60, %p61
      %p63 = scmp.ne.s32.totalorder %s49, %s50
      %p64 = scmp.eq.s32.totalorder %s28, 3
      %p65 = por %p63, %p64
      %p67 = scmp.ne.s32.totalorder %s50, %s66
      %p68 = scmp.eq.s32.totalorder %s28, 0
      %p69 = por %p67, %p68
      %s71 = sadd.s32 %s70, 1
      %p74 = scmp.eq.s32.totalorder %s22, 3
      %p75 = scmp.ne.s32.totalorder %s70, %s72
      %p76 = scmp.eq.s32.totalorder %s22, 0
      %p77 = por %p75, %p76
      %p78 = scmp.ne.s32.totalorder %s70, %s72
      %p79 = scmp.eq.s32.totalorder %s27, 3
      %p80 = por %p78, %p79
      %p81 = scmp.ne.s32.totalorder %s72, %s73
      %p82 = scmp.eq.s32.totalorder %s27, 0
      %p83 = por %p81, %p82
      %p84 = scmp.ne.s32.totalorder %s72, %s73
      %p85 = scmp.eq.s32.totalorder %s28, 3
      %p86 = por %p84, %p85
      %p88 = scmp.ne.s32.totalorder %s73, %s87
      %p89 = scmp.eq.s32.totalorder %s28, 0
      %p90 = por %p88, %p89
      %s92 = sadd.s32 %s91, 1
      %p95 = scmp.eq.s32.totalorder %s22, 3
      %p96 = scmp.ne.s32.totalorder %s91, %s93
      %p97 = scmp.eq.s32.totalorder %s22, 0
      %p98 = por %p96, %p97
      %p99 = scmp.ne.s32.totalorder %s91, %s93
      %p100 = scmp.eq.s32.totalorder %s27, 3
      %p101 = por %p99, %p100
      %p102 = scmp.ne.s32.totalorder %s93, %s94
      %p103 = scmp.eq.s32.totalorder %s27, 0
      %p104 = por %p102, %p103
      %p105 = scmp.ne.s32.totalorder %s93, %s94
      %p106 = scmp.eq.s32.totalorder %s28, 3
      %p107 = por %p105, %p106
      %p109 = scmp.ne.s32.totalorder %s94, %s108
      %p110 = scmp.eq.s32.totalorder %s28, 0
      %p111 = por %p109, %p110
      %s113 = sadd.s32 %s112, 1
      %p116 = scmp.eq.s32.totalorder %s22, 3
      %p117 = scmp.ne.s32.totalorder %s112, %s114
      %p118 = scmp.eq.s32.totalorder %s22, 0
      %p119 = por %p117, %p118
      %p120 = scmp.ne.s32.totalorder %s112, %s114
      %p121 = scmp.eq.s32.totalorder %s27, 3
      %p122 = por %p120, %p121
      %p123 = scmp.ne.s32.totalorder %s114, %s115
      %p124 = scmp.eq.s32.totalorder %s27, 0
      %p125 = por %p123, %p124
      %p126 = scmp.ne.s32.totalorder %s114, %s115
      %p127 = scmp.eq.s32.totalorder %s28, 3
      %p128 = por %p126, %p127
      %p130 = scmp.ne.s32.totalorder %s115, %s129
      %p131 = scmp.eq.s32.totalorder %s28, 0
      %p132 = por %p130, %p131
      %s134 = sadd.s32 %s133, 1
      %p137 = scmp.eq.s32.totalorder %s22, 3
      %p138 = scmp.ne.s32.totalorder %s133, %s135
      %p139 = scmp.eq.s32.totalorder %s22, 0
      %p140 = por %p138, %p139
      %p141 = scmp.ne.s32.totalorder %s133, %s135
      %p142 = scmp.eq.s32.totalorder %s27, 3
      %p143 = por %p141, %p142
      %p144 = scmp.ne.s32.totalorder %s135, %s136
      %p145 = scmp.eq.s32.totalorder %s27, 0
      %p146 = por %p144, %p145
      %p147 = scmp.ne.s32.totalorder %s135, %s136
      %p148 = scmp.eq.s32.totalorder %s28, 3
      %p149 = por %p147, %p148
      %p151 = scmp.ne.s32.totalorder %s136, %s150
      %p152 = scmp.eq.s32.totalorder %s28, 0
      %p153 = por %p151, %p152
      %s154 = ssub.s32 %s29, %s41
      %p155 = scmp.eq.s32.totalorder %s154, 0
      %s157 = sadd.s32 %s156, 1
      %s158 = scalar_select %p155, %s156, %s157
      %p161 = pneg %p155
      %p162 = scmp.eq.s32.totalorder %s22, 3
      %p163 = por %p161, %p162
      %p164 = scmp.ne.s32.totalorder %s156, %s159
      %p165 = scmp.eq.s32.totalorder %s22, 0
      %p166 = por %p164, %p165
      %p167 = scmp.ne.s32.totalorder %s156, %s159
      %p168 = scmp.eq.s32.totalorder %s27, 3
      %p169 = por %p167, %p168
      %p170 = scmp.ne.s32.totalorder %s159, %s160
      %p171 = scmp.eq.s32.totalorder %s27, 0
      %p172 = por %p170, %p171
      %p173 = scmp.ne.s32.totalorder %s159, %s160
      %p174 = scmp.eq.s32.totalorder %s28, 3
      %p175 = por %p173, %p174
      %p177 = scmp.ne.s32.totalorder %s160, %s176
      %p178 = scmp.eq.s32.totalorder %s28, 0
      %p179 = por %p177, %p178
      %s180 = ssub.s32 %s29, %s41
      %p181 = scmp.eq.s32.totalorder %s180, 0
      %s183 = sadd.s32 %s182, 1
      %s184 = scalar_select %p181, %s182, %s183
      %p187 = pneg %p181
      %p188 = scmp.eq.s32.totalorder %s22, 3
      %p189 = por %p187, %p188
      %p190 = scmp.ne.s32.totalorder %s182, %s185
      %p191 = scmp.eq.s32.totalorder %s22, 0
      %p192 = por %p190, %p191
      %p193 = scmp.ne.s32.totalorder %s182, %s185
      %p194 = scmp.eq.s32.totalorder %s27, 3
      %p195 = por %p193, %p194
      %p196 = scmp.ne.s32.totalorder %s185, %s186
      %p197 = scmp.eq.s32.totalorder %s27, 0
      %p198 = por %p196, %p197
      %p199 = scmp.ne.s32.totalorder %s185, %s186
      %p200 = scmp.eq.s32.totalorder %s28, 3
      %p201 = por %p199, %p200
      %p203 = scmp.ne.s32.totalorder %s186, %s202
      %p204 = scmp.eq.s32.totalorder %s28, 0
      %p205 = por %p203, %p204
      %p206 = scmp.le.s32.totalorder 1, %s22
      %p207 = scmp.lt.s32.totalorder %s22, 5
      %p208 = pnand %p206, %p207
      %p209 = pneg %p208
      // Predicated region
      $region9: #{tpu_custom_call.1} parent=5 // pred_check
        _
      $region10: #{tpu_custom_call.1} parent=5 // pred_check_branch
        %211 = sbr.rel (%p208) target = $region12
      $region11: #{tpu_custom_call.1} parent=5 // pred_region
        %s212 = ssub.s32 %s22, 1
        // Predicated region
        $region13: #{tpu_custom_call.1} parent=11 // pred_check
          %p213 = pneg %p83
        $region14: #{tpu_custom_call.1} parent=11 // pred_check_branch
          %215 = sbr.rel (%p213) target = $region16
        $region15: #{tpu_custom_call.1} parent=11 // pred_region
          _
        $region16: #{tpu_custom_call.1} parent=11 // pred_fallthru
          _
        // Predicated region
        $region17: #{tpu_custom_call.1} parent=11 // pred_check
          %p216 = pneg %p104
        $region18: #{tpu_custom_call.1} parent=11 // pred_check_branch
          %218 = sbr.rel (%p216) target = $region20
        $region19: #{tpu_custom_call.1} parent=11 // pred_region
          _
        $region20: #{tpu_custom_call.1} parent=11 // pred_fallthru
          _
        // Predicated region
        $region21: #{tpu_custom_call.1} parent=11 // pred_check
          %p219 = pneg %p125
        $region22: #{tpu_custom_call.1} parent=11 // pred_check_branch
          %221 = sbr.rel (%p219) target = $region24
        $region23: #{tpu_custom_call.1} parent=11 // pred_region
          _
        $region24: #{tpu_custom_call.1} parent=11 // pred_fallthru
          _
        // Predicated region
        $region25: #{tpu_custom_call.1} parent=11 // pred_check
          %p222 = pneg %p146
        $region26: #{tpu_custom_call.1} parent=11 // pred_check_branch
          %224 = sbr.rel (%p222) target = $region28
        $region27: #{tpu_custom_call.1} parent=11 // pred_region
          _
        $region28: #{tpu_custom_call.1} parent=11 // pred_fallthru
          _
      $region12: #{tpu_custom_call.1} parent=5 // pred_fallthru
        _
      %p225 = scmp.lt.s32.totalorder %s22, 4
      // Predicated region
      $region29: #{tpu_custom_call.1} parent=5 // pred_check
        %p226 = pneg %p225
      $region30: #{tpu_custom_call.1} parent=5 // pred_check_branch
        %228 = sbr.rel (%p226) target = $region32
      $region31: #{tpu_custom_call.1} parent=5 // pred_region
        // Predicated region
        $region33: #{tpu_custom_call.1} parent=31 // pred_check
          %p229 = pneg %p56
        $region34: #{tpu_custom_call.1} parent=31 // pred_check_branch
          %231 = sbr.rel (%p229) target = $region36
        $region35: #{tpu_custom_call.1} parent=31 // pred_region
          %s232 = sand.u32 %s46, 1
          %s233 = scalar_lea.sflag [#allocation5], %s232
          %s234 = sand.u32 %s46, 1
          %s235 = smul.addr %s234, 128
          %s236 = scalar_lea.vmem [#allocation4], %s235
          %s237 = smul.u32 16, %s30
          %s239 = ssub.s32 2048, 2048
          %240 = vsyncadd %s233, %s239
          %s241 = smul.addr %s29, 32
          %s242 = sadd.s32 %s237, %s241
          %s243 = smul.addr %s242, 128
          %s244 = scalar_lea.hbm %s0, %s243
          %s245 = sshll.u32 %s236, 4
          %s246 = int_to_ptr.vmem [resolvable:$true] %s245
          %251 = dma.hbm_to_vmem [thread:$0]  %s244, 2048, %s246, %s233, 128, 128, 8
        $region36: #{tpu_custom_call.1} parent=31 // pred_fallthru
          _
      $region32: #{tpu_custom_call.1} parent=5 // pred_fallthru
        _
      %p252 = scmp.le.s32.totalorder 1, %s22
      %p253 = scmp.lt.s32.totalorder %s22, 5
      %p254 = pnand %p252, %p253
      %p255 = pneg %p254
      // Predicated region
      $region37: #{tpu_custom_call.1} parent=5 // pred_check
        _
      $region38: #{tpu_custom_call.1} parent=5 // pred_check_branch
        %257 = sbr.rel (%p254) target = $region40
      $region39: #{tpu_custom_call.1} parent=5 // pred_region
        %s258 = ssub.s32 %s22, 1
        %s259 = sand.u32 %s49, 1
        %s260 = scalar_lea.sflag [#allocation5], %s259
        %s261 = sand.u32 %s49, 1
        %s262 = smul.addr %s261, 128
        %s263 = scalar_lea.vmem [#allocation4], %s262
        // Predicated region
        $region41: #{tpu_custom_call.1} parent=39 // pred_check
          %p264 = pneg %p62
        $region42: #{tpu_custom_call.1} parent=39 // pred_check_branch
          %266 = sbr.rel (%p264) target = $region44
        $region43: #{tpu_custom_call.1} parent=39 // pred_region
          %267 = dma.done %s260, 2048
        $region44: #{tpu_custom_call.1} parent=39 // pred_fallthru
          _
        %s268 = sand.u32 %s49, 1
        %s269 = scalar_lea.sflag [#allocation5], %s268
        %s270 = sand.u32 %s49, 1
        %s271 = smul.addr %s270, 128
        %s272 = scalar_lea.vmem [#allocation4], %s271
        %p273 = pneg %p62
        %p274 = pneg %p59
        %p275 = pneg %p83
        %p276 = pneg %p80
        %p277 = pneg %p104
        %p278 = pneg %p101
        %p279 = pneg %p125
        %p280 = pneg %p122
        %p281 = pneg %p146
        %p282 = pneg %p143
        %p283 = pneg %p172
        %p284 = pneg %p169
        %s285 = sand.u32 %s159, 1
        %s286 = scalar_lea.sflag [#allocation6], %s285
        %s287 = sand.u32 %s159, 1
        %s288 = scalar_lea.vmem [#allocation7], %s287
        %p289 = pneg %p198
        %p290 = pneg %p195
        %s291 = sand.u32 %s185, 1
        %s292 = scalar_lea.sflag [#allocation9], %s291
        %s293 = sand.u32 %s185, 1
        %s294 = scalar_lea.vmem [#allocation8], %s293
        %s295 = smul.u32 16, %s32
        %p296 = scmp.eq.s32.totalorder %s32, 0
        // Predicated region
        $region45: #{tpu_custom_call.1} parent=39 // pred_check
          %p297 = pneg %p296
        $region46: #{tpu_custom_call.1} parent=39 // pred_check_branch
          %299 = sbr.rel (%p297) target = $region48
        $region47: #{tpu_custom_call.1} parent=39 // pred_region
          %vm300 = vcmask 253952
          %301 = vst.msk [vmem:[#allocation2] sm:$0x1] %vm300, 0.0
          %302 = vst.msk [vmem:[#allocation3] sm:$0x1] %vm300, 0.0
        $region48: #{tpu_custom_call.1} parent=39 // pred_fallthru
          _
        %v303 = vld [vmem:[%s263] sm:$0xff]
        %v304 = vld [vmem:[%s263 + $0x8] sm:$0xff]
        %v305 = vld [vmem:[%s263 + $0x10] sm:$0xff]
        %v306 = vld [vmem:[%s263 + $0x18] sm:$0xff]
        %v307 = vld [vmem:[%s263 + $0x20] sm:$0xff]
        %v308 = vld [vmem:[%s263 + $0x28] sm:$0xff]
        %v309 = vld [vmem:[%s263 + $0x30] sm:$0xff]
        %v310 = vld [vmem:[%s263 + $0x38] sm:$0xff]
        %v311 = vld [vmem:[%s263 + $0x40] sm:$0xff]
        %v312 = vld [vmem:[%s263 + $0x48] sm:$0xff]
        %v313 = vld [vmem:[%s263 + $0x50] sm:$0xff]
        %v314 = vld [vmem:[%s263 + $0x58] sm:$0xff]
        %v315 = vld [vmem:[%s263 + $0x60] sm:$0xff]
        %v316 = vld [vmem:[%s263 + $0x68] sm:$0xff]
        %v317 = vld [vmem:[%s263 + $0x70] sm:$0xff]
        %v318 = vld [vmem:[%s263 + $0x78] sm:$0xff]
        %v319 = vadd.f32 %v303, %v304
        %v320 = vadd.f32 %v319, %v305
        %v321 = vadd.f32 %v320, %v306
        %v322 = vadd.f32 %v321, %v307
        %v323 = vadd.f32 %v322, %v308
        %v324 = vadd.f32 %v323, %v309
        %v325 = vadd.f32 %v324, %v310
        %v326 = vadd.f32 %v325, %v311
        %v327 = vadd.f32 %v326, %v312
        %v328 = vadd.f32 %v327, %v313
        %v329 = vadd.f32 %v328, %v314
        %v330 = vadd.f32 %v329, %v315
        %v331 = vadd.f32 %v330, %v316
        %v332 = vadd.f32 %v331, %v317
        %v333 = vadd.f32 %v332, %v318
        %v334 = vrot.slane %v333, 4
        %v335 = vadd.f32 %v333, %v334
        %v336 = vrot.slane %v335, 2
        %v337 = vadd.f32 %v335, %v336
        %v338 = vrot.slane %v337, 1
        %v339 = vadd.f32 %v337, %v338
        %v340 = vmul.f32 %v303, %v303
        %v341 = vmul.f32 %v304, %v304
        %v342 = vmul.f32 %v305, %v305
        %v343 = vmul.f32 %v306, %v306
        %v344 = vmul.f32 %v307, %v307
        %v345 = vmul.f32 %v308, %v308
        %v346 = vmul.f32 %v309, %v309
        %v347 = vmul.f32 %v310, %v310
        %v348 = vmul.f32 %v311, %v311
        %v349 = vmul.f32 %v312, %v312
        %v350 = vmul.f32 %v313, %v313
        %v351 = vmul.f32 %v314, %v314
        %v352 = vmul.f32 %v315, %v315
        %v353 = vmul.f32 %v316, %v316
        %v354 = vmul.f32 %v317, %v317
        %v355 = vmul.f32 %v318, %v318
        %v356 = vadd.f32 %v340, %v341
        %v357 = vadd.f32 %v356, %v342
        %v358 = vadd.f32 %v357, %v343
        %v359 = vadd.f32 %v358, %v344
        %v360 = vadd.f32 %v359, %v345
        %v361 = vadd.f32 %v360, %v346
        %v362 = vadd.f32 %v361, %v347
        %v363 = vadd.f32 %v362, %v348
        %v364 = vadd.f32 %v363, %v349
        %v365 = vadd.f32 %v364, %v350
        %v366 = vadd.f32 %v365, %v351
        %v367 = vadd.f32 %v366, %v352
        %v368 = vadd.f32 %v367, %v353
        %v369 = vadd.f32 %v368, %v354
        %v370 = vadd.f32 %v369, %v355
        %v371 = vrot.slane %v370, 4
        %v372 = vadd.f32 %v370, %v371
        %v373 = vrot.slane %v372, 2
        %v374 = vadd.f32 %v372, %v373
        %v375 = vrot.slane %v374, 1
        %v376 = vadd.f32 %v374, %v375
        %v377 = vld [vmem:[#allocation2] sm:$0x1]
        %v378 = vld [vmem:[%s1] sm:$0xff]
        %v379 = vld [vmem:[%s1 + $0x8] sm:$0xff]
        %v380 = vld [vmem:[%s1 + $0x10] sm:$0xff]
        %v381 = vld [vmem:[%s1 + $0x18] sm:$0xff]
        %v382 = vld [vmem:[%s1 + $0x20] sm:$0xff]
        %v383 = vld [vmem:[%s1 + $0x28] sm:$0xff]
        %v384 = vld [vmem:[%s1 + $0x30] sm:$0xff]
        %v385 = vld [vmem:[%s1 + $0x38] sm:$0xff]
        %v386 = vld [vmem:[%s1 + $0x40] sm:$0xff]
        %v387 = vld [vmem:[%s1 + $0x48] sm:$0xff]
        %v388 = vld [vmem:[%s1 + $0x50] sm:$0xff]
        %v389 = vld [vmem:[%s1 + $0x58] sm:$0xff]
        %v390 = vld [vmem:[%s1 + $0x60] sm:$0xff]
        %v391 = vld [vmem:[%s1 + $0x68] sm:$0xff]
        %v392 = vld [vmem:[%s1 + $0x70] sm:$0xff]
        %v393 = vld [vmem:[%s1 + $0x78] sm:$0xff]
        %394 = vmatprep.subr.mxu0 0.0
        %395 = vmatpush1.msra.mxu0 %v378
        %396 = vmatprep.subr.mxu0 0.0
        %397 = vmatpush1.msra.mxu0 %v379
        %398 = vmatprep.subr.mxu0 0.0
        %399 = vmatpush1.msra.mxu0 %v380
        %400 = vmatprep.subr.mxu0 0.0
        %401 = vmatpush1.msra.mxu0 %v381
        %402 = vmatprep.subr.mxu0 0.0
        %403 = vmatpush1.msra.mxu0 %v382
        %404 = vmatprep.subr.mxu0 0.0
        %405 = vmatpush1.msra.mxu0 %v383
        %406 = vmatprep.subr.mxu0 0.0
        %407 = vmatpush1.msra.mxu0 %v384
        %408 = vmatprep.subr.mxu0 0.0
        %409 = vmatpush1.msra.mxu0 %v385
        %410 = vmatprep.subr.mxu0 0.0
        %411 = vmatpush1.msra.mxu0 %v386
        %412 = vmatprep.subr.mxu0 0.0
        %413 = vmatpush1.msra.mxu0 %v387
        %414 = vmatprep.subr.mxu0 0.0
        %415 = vmatpush1.msra.mxu0 %v388
        %416 = vmatprep.subr.mxu0 0.0
        %417 = vmatpush1.msra.mxu0 %v389
        %418 = vmatprep.subr.mxu0 0.0
        %419 = vmatpush1.msra.mxu0 %v390
        %420 = vmatprep.subr.mxu0 0.0
        %421 = vmatpush1.msra.mxu0 %v391
        %422 = vmatprep.subr.mxu0 0.0
        %423 = vmatpush1.msra.mxu0 %v392
        %424 = vmatprep.subr.mxu0 0.0
        %425 = vmatpush1.msra.mxu0 %v393
        %426 = vmatprep.subr.mxu0 0.0
        %427 = vmatpush1.msra.mxu0 0.0
        %428 = vmatprep.subr.mxu0 0.0
        %429 = vmatpush1.msra.mxu0 0.0
        %430 = vmatprep.subr.mxu0 0.0
        %431 = vmatpush1.msra.mxu0 0.0
        %432 = vmatprep.subr.mxu0 0.0
        %433 = vmatpush1.msra.mxu0 0.0
        %434 = vmatprep.subr.mxu0 0.0
        %435 = vmatpush1.msra.mxu0 0.0
        %436 = vmatprep.subr.mxu0 0.0
        %437 = vmatpush1.msra.mxu0 0.0
        %438 = vmatprep.subr.mxu0 0.0
        %439 = vmatpush1.msra.mxu0 0.0
        %440 = vmatprep.subr.mxu0 0.0
        %441 = vmatpush1.msra.mxu0 0.0
        %442 = vmatprep.subr.mxu0 0.0
        %443 = vmatpush1.msra.mxu0 0.0
        %444 = vmatprep.subr.mxu0 0.0
        %445 = vmatpush1.msra.mxu0 0.0
        %446 = vmatprep.subr.mxu0 0.0
        %447 = vmatpush1.msra.mxu0 0.0
        %448 = vmatprep.subr.mxu0 0.0
        %449 = vmatpush1.msra.mxu0 0.0
        %450 = vmatprep.subr.mxu0 0.0
        %451 = vmatpush1.msra.mxu0 0.0
        %452 = vmatprep.subr.mxu0 0.0
        %453 = vmatpush1.msra.mxu0 0.0
        %454 = vmatprep.subr.mxu0 0.0
        %455 = vmatpush1.msra.mxu0 0.0
        %456 = vmatprep.subr.mxu0 0.0
        %457 = vmatpush1.msra.mxu0 0.0
        %458 = vmatprep.mubr.f32.mxu0 0.0
        %459 = vmatmul.mubr.f32.gmra.mrb[0].mxu0 %v339
        %v460 = vpop.f32.mrb[0].mxu0
        %v461 = vadd.f32 0.0, %v460
        %v462 = vpop.f32.mrb[0].mxu0
        %463 = vdwg.mxu0
        %v464 = vadd.f32 %v377, %v461
        %vm465 = vcmask 253952
        %466 = vst.msk [vmem:[#allocation2] sm:$0x1] %vm465, %v464
        %v467 = vld [vmem:[#allocation3] sm:$0x1]
        %v468 = vld [vmem:[%s1] sm:$0xff]
        %v469 = vld [vmem:[%s1 + $0x8] sm:$0xff]
        %v470 = vld [vmem:[%s1 + $0x10] sm:$0xff]
        %v471 = vld [vmem:[%s1 + $0x18] sm:$0xff]
        %v472 = vld [vmem:[%s1 + $0x20] sm:$0xff]
        %v473 = vld [vmem:[%s1 + $0x28] sm:$0xff]
        %v474 = vld [vmem:[%s1 + $0x30] sm:$0xff]
        %v475 = vld [vmem:[%s1 + $0x38] sm:$0xff]
        %v476 = vld [vmem:[%s1 + $0x40] sm:$0xff]
        %v477 = vld [vmem:[%s1 + $0x48] sm:$0xff]
        %v478 = vld [vmem:[%s1 + $0x50] sm:$0xff]
        %v479 = vld [vmem:[%s1 + $0x58] sm:$0xff]
        %v480 = vld [vmem:[%s1 + $0x60] sm:$0xff]
        %v481 = vld [vmem:[%s1 + $0x68] sm:$0xff]
        %v482 = vld [vmem:[%s1 + $0x70] sm:$0xff]
        %v483 = vld [vmem:[%s1 + $0x78] sm:$0xff]
        %484 = vmatprep.subr.mxu0 0.0
        %485 = vmatpush1.msra.mxu0 %v468
        %486 = vmatprep.subr.mxu0 0.0
        %487 = vmatpush1.msra.mxu0 %v469
        %488 = vmatprep.subr.mxu0 0.0
        %489 = vmatpush1.msra.mxu0 %v470
        %490 = vmatprep.subr.mxu0 0.0
        %491 = vmatpush1.msra.mxu0 %v471
        %492 = vmatprep.subr.mxu0 0.0
        %493 = vmatpush1.msra.mxu0 %v472
        %494 = vmatprep.subr.mxu0 0.0
        %495 = vmatpush1.msra.mxu0 %v473
        %496 = vmatprep.subr.mxu0 0.0
        %497 = vmatpush1.msra.mxu0 %v474
        %498 = vmatprep.subr.mxu0 0.0
        %499 = vmatpush1.msra.mxu0 %v475
        %500 = vmatprep.subr.mxu0 0.0
        %501 = vmatpush1.msra.mxu0 %v476
        %502 = vmatprep.subr.mxu0 0.0
        %503 = vmatpush1.msra.mxu0 %v477
        %504 = vmatprep.subr.mxu0 0.0
        %505 = vmatpush1.msra.mxu0 %v478
        %506 = vmatprep.subr.mxu0 0.0
        %507 = vmatpush1.msra.mxu0 %v479
        %508 = vmatprep.subr.mxu0 0.0
        %509 = vmatpush1.msra.mxu0 %v480
        %510 = vmatprep.subr.mxu0 0.0
        %511 = vmatpush1.msra.mxu0 %v481
        %512 = vmatprep.subr.mxu0 0.0
        %513 = vmatpush1.msra.mxu0 %v482
        %514 = vmatprep.subr.mxu0 0.0
        %515 = vmatpush1.msra.mxu0 %v483
        %516 = vmatprep.subr.mxu0 0.0
        %517 = vmatpush1.msra.mxu0 0.0
        %518 = vmatprep.subr.mxu0 0.0
        %519 = vmatpush1.msra.mxu0 0.0
        %520 = vmatprep.subr.mxu0 0.0
        %521 = vmatpush1.msra.mxu0 0.0
        %522 = vmatprep.subr.mxu0 0.0
        %523 = vmatpush1.msra.mxu0 0.0
        %524 = vmatprep.subr.mxu0 0.0
        %525 = vmatpush1.msra.mxu0 0.0
        %526 = vmatprep.subr.mxu0 0.0
        %527 = vmatpush1.msra.mxu0 0.0
        %528 = vmatprep.subr.mxu0 0.0
        %529 = vmatpush1.msra.mxu0 0.0
        %530 = vmatprep.subr.mxu0 0.0
        %531 = vmatpush1.msra.mxu0 0.0
        %532 = vmatprep.subr.mxu0 0.0
        %533 = vmatpush1.msra.mxu0 0.0
        %534 = vmatprep.subr.mxu0 0.0
        %535 = vmatpush1.msra.mxu0 0.0
        %536 = vmatprep.subr.mxu0 0.0
        %537 = vmatpush1.msra.mxu0 0.0
        %538 = vmatprep.subr.mxu0 0.0
        %539 = vmatpush1.msra.mxu0 0.0
        %540 = vmatprep.subr.mxu0 0.0
        %541 = vmatpush1.msra.mxu0 0.0
        %542 = vmatprep.subr.mxu0 0.0
        %543 = vmatpush1.msra.mxu0 0.0
        %544 = vmatprep.subr.mxu0 0.0
        %545 = vmatpush1.msra.mxu0 0.0
        %546 = vmatprep.subr.mxu0 0.0
        %547 = vmatpush1.msra.mxu0 0.0
        %548 = vmatprep.mubr.f32.mxu0 0.0
        %549 = vmatmul.mubr.f32.gmra.mrb[0].mxu0 %v376
        %v550 = vpop.f32.mrb[0].mxu0
        %v551 = vadd.f32 0.0, %v550
        %v552 = vpop.f32.mrb[0].mxu0
        %553 = vdwg.mxu0
        %v554 = vadd.f32 %v467, %v551
        %555 = vst.msk [vmem:[#allocation3] sm:$0x1] %vm465, %v554
        %p556 = scmp.eq.s32.totalorder %s32, 1
        // Predicated region
        $region49: #{tpu_custom_call.1} parent=39 // pred_check
          %p557 = pneg %p556
        $region50: #{tpu_custom_call.1} parent=39 // pred_check_branch
          %559 = sbr.rel (%p557) target = $region52
        $region51: #{tpu_custom_call.1} parent=39 // pred_region
          %v560 = vld [vmem:[#allocation2] sm:$0x1]
          %v561 = vmul.f32 %v560, 0.0009765625
          %v562 = vld [vmem:[#allocation3] sm:$0x1]
          %v563 = vmul.f32 %v562, 0.0009765625
          %v564 = vmul.f32 %v561, %v561
          %v565 = vsub.f32 %v563, %v564
          %v566 = vmax.f32 %v565, 0.0
          %v567 = vadd.f32 %v566, 1e-06
          %v568 = vrsqrt.pop %v567
          %v569 = vld [vmem:[%s2] sm:$0xff]
          %v570 = vld [vmem:[%s2 + $0x8] sm:$0xff]
          %v571 = vld [vmem:[%s2 + $0x10] sm:$0xff]
          %v572 = vld [vmem:[%s2 + $0x18] sm:$0xff]
          %vm573 = vcmask 261120
          %v575 = vsel %vm573, %v561, 0
          %577 = vmatprep.subr.mxu0 0.0
          %578 = vmatpush1.msra.mxu0 %v569
          %579 = vmatprep.subr.mxu0 0.0
          %580 = vmatpush1.msra.mxu0 %v570
          %581 = vmatprep.subr.mxu0 0.0
          %582 = vmatpush1.msra.mxu0 %v571
          %583 = vmatprep.subr.mxu0 0.0
          %584 = vmatpush1.msra.mxu0 %v572
          %585 = vmatprep.subr.mxu0 0.0
          %586 = vmatpush1.msra.mxu0 0.0
          %587 = vmatprep.subr.mxu0 0.0
          %588 = vmatpush1.msra.mxu0 0.0
          %589 = vmatprep.subr.mxu0 0.0
          %590 = vmatpush1.msra.mxu0 0.0
          %591 = vmatprep.subr.mxu0 0.0
          %592 = vmatpush1.msra.mxu0 0.0
          %593 = vmatprep.subr.mxu0 0.0
          %594 = vmatpush1.msra.mxu0 0.0
          %595 = vmatprep.subr.mxu0 0.0
          %596 = vmatpush1.msra.mxu0 0.0
          %597 = vmatprep.subr.mxu0 0.0
          %598 = vmatpush1.msra.mxu0 0.0
          %599 = vmatprep.subr.mxu0 0.0
          %600 = vmatpush1.msra.mxu0 0.0
          %601 = vmatprep.subr.mxu0 0.0
          %602 = vmatpush1.msra.mxu0 0.0
          %603 = vmatprep.subr.mxu0 0.0
          %604 = vmatpush1.msra.mxu0 0.0
          %605 = vmatprep.subr.mxu0 0.0
          %606 = vmatpush1.msra.mxu0 0.0
          %607 = vmatprep.subr.mxu0 0.0
          %608 = vmatpush1.msra.mxu0 0.0
          %609 = vmatprep.subr.mxu0 0.0
          %610 = vmatpush1.msra.mxu0 0.0
          %611 = vmatprep.subr.mxu0 0.0
          %612 = vmatpush1.msra.mxu0 0.0
          %613 = vmatprep.subr.mxu0 0.0
          %614 = vmatpush1.msra.mxu0 0.0
          %615 = vmatprep.subr.mxu0 0.0
          %616 = vmatpush1.msra.mxu0 0.0
          %617 = vmatprep.subr.mxu0 0.0
          %618 = vmatpush1.msra.mxu0 0.0
          %619 = vmatprep.subr.mxu0 0.0
          %620 = vmatpush1.msra.mxu0 0.0
          %621 = vmatprep.subr.mxu0 0.0
          %622 = vmatpush1.msra.mxu0 0.0
          %623 = vmatprep.subr.mxu0 0.0
          %624 = vmatpush1.msra.mxu0 0.0
          %625 = vmatprep.subr.mxu0 0.0
          %626 = vmatpush1.msra.mxu0 0.0
          %627 = vmatprep.subr.mxu0 0.0
          %628 = vmatpush1.msra.mxu0 0.0
          %629 = vmatprep.subr.mxu0 0.0
          %630 = vmatpush1.msra.mxu0 0.0
          %631 = vmatprep.subr.mxu0 0.0
          %632 = vmatpush1.msra.mxu0 0.0
          %633 = vmatprep.subr.mxu0 0.0
          %634 = vmatpush1.msra.mxu0 0.0
          %635 = vmatprep.subr.mxu0 0.0
          %636 = vmatpush1.msra.mxu0 0.0
          %637 = vmatprep.subr.mxu0 0.0
          %638 = vmatpush1.msra.mxu0 0.0
          %639 = vmatprep.subr.mxu0 0.0
          %640 = vmatpush1.msra.mxu0 0.0
          %641 = vmatprep.mubr.f32.mxu0 0.0
          %642 = vmatmul.mubr.f32.gmra.mrb[0].mxu0 %v575
          %v643 = vpop.f32.mrb[0].mxu0
          %v644 = vadd.f32 0.0, %v643
          %v645 = vpop.f32.mrb[0].mxu0
          %646 = vdwg.mxu0
          %v648 = vsel %vm573, %v568, 0
          %650 = vmatprep.subr.mxu0 0.0
          %651 = vmatpush1.msra.mxu0 %v569
          %652 = vmatprep.subr.mxu0 0.0
          %653 = vmatpush1.msra.mxu0 %v570
          %654 = vmatprep.subr.mxu0 0.0
          %655 = vmatpush1.msra.mxu0 %v571
          %656 = vmatprep.subr.mxu0 0.0
          %657 = vmatpush1.msra.mxu0 %v572
          %658 = vmatprep.subr.mxu0 0.0
          %659 = vmatpush1.msra.mxu0 0.0
          %660 = vmatprep.subr.mxu0 0.0
          %661 = vmatpush1.msra.mxu0 0.0
          %662 = vmatprep.subr.mxu0 0.0
          %663 = vmatpush1.msra.mxu0 0.0
          %664 = vmatprep.subr.mxu0 0.0
          %665 = vmatpush1.msra.mxu0 0.0
          %666 = vmatprep.subr.mxu0 0.0
          %667 = vmatpush1.msra.mxu0 0.0
          %668 = vmatprep.subr.mxu0 0.0
          %669 = vmatpush1.msra.mxu0 0.0
          %670 = vmatprep.subr.mxu0 0.0
          %671 = vmatpush1.msra.mxu0 0.0
          %672 = vmatprep.subr.mxu0 0.0
          %673 = vmatpush1.msra.mxu0 0.0
          %674 = vmatprep.subr.mxu0 0.0
          %675 = vmatpush1.msra.mxu0 0.0
          %676 = vmatprep.subr.mxu0 0.0
          %677 = vmatpush1.msra.mxu0 0.0
          %678 = vmatprep.subr.mxu0 0.0
          %679 = vmatpush1.msra.mxu0 0.0
          %680 = vmatprep.subr.mxu0 0.0
          %681 = vmatpush1.msra.mxu0 0.0
          %682 = vmatprep.subr.mxu0 0.0
          %683 = vmatpush1.msra.mxu0 0.0
          %684 = vmatprep.subr.mxu0 0.0
          %685 = vmatpush1.msra.mxu0 0.0
          %686 = vmatprep.subr.mxu0 0.0
          %687 = vmatpush1.msra.mxu0 0.0
          %688 = vmatprep.subr.mxu0 0.0
          %689 = vmatpush1.msra.mxu0 0.0
          %690 = vmatprep.subr.mxu0 0.0
          %691 = vmatpush1.msra.mxu0 0.0
          %692 = vmatprep.subr.mxu0 0.0
          %693 = vmatpush1.msra.mxu0 0.0
          %694 = vmatprep.subr.mxu0 0.0
          %695 = vmatpush1.msra.mxu0 0.0
          %696 = vmatprep.subr.mxu0 0.0
          %697 = vmatpush1.msra.mxu0 0.0
          %698 = vmatprep.subr.mxu0 0.0
          %699 = vmatpush1.msra.mxu0 0.0
          %700 = vmatprep.subr.mxu0 0.0
          %701 = vmatpush1.msra.mxu0 0.0
          %702 = vmatprep.subr.mxu0 0.0
          %703 = vmatpush1.msra.mxu0 0.0
          %704 = vmatprep.subr.mxu0 0.0
          %705 = vmatpush1.msra.mxu0 0.0
          %706 = vmatprep.subr.mxu0 0.0
          %707 = vmatpush1.msra.mxu0 0.0
          %708 = vmatprep.subr.mxu0 0.0
          %709 = vmatpush1.msra.mxu0 0.0
          %710 = vmatprep.subr.mxu0 0.0
          %711 = vmatpush1.msra.mxu0 0.0
          %712 = vmatprep.subr.mxu0 0.0
          %713 = vmatpush1.msra.mxu0 0.0
          %714 = vmatprep.mubr.f32.mxu0 0.0
          %715 = vmatmul.mubr.f32.gmra.mrb[0].mxu0 %v648
          %v716 = vpop.f32.mrb[0].mxu0
          %v717 = vadd.f32 0.0, %v716
          %v718 = vpop.f32.mrb[0].mxu0
          %719 = vdwg.mxu0
          %v720 = vld [vmem:[%s3] sm:$0x1]
          %v721 = vmul.f32 %v717, %v720
          %722 = vst [vmem:[%s288] sm:$0x1] %v721
          %v723 = vld [vmem:[%s4] sm:$0x1]
          %v724 = vmul.f32 %v644, %v721
          %v725 = vsub.f32 %v723, %v724
          %726 = vst [vmem:[%s294] sm:$0x1] %v725
        $region52: #{tpu_custom_call.1} parent=39 // pred_fallthru
          _
        %s727 = sand.u32 %s159, 1
        %s728 = scalar_lea.sflag [#allocation6], %s727
        %s729 = sand.u32 %s159, 1
        %s730 = scalar_lea.vmem [#allocation7], %s729
        %s731 = sand.u32 %s185, 1
        %s732 = scalar_lea.sflag [#allocation9], %s731
        %s733 = sand.u32 %s185, 1
        %s734 = scalar_lea.vmem [#allocation8], %s733
        // Predicated region
        $region53: #{tpu_custom_call.1} parent=39 // pred_check
          %p735 = pneg %p169
        $region54: #{tpu_custom_call.1} parent=39 // pred_check_branch
          %737 = sbr.rel (%p735) target = $region56
        $region55: #{tpu_custom_call.1} parent=39 // pred_region
          %s739 = ssub.s32 16, 16
          %740 = vsyncadd %s728, %s739
          %s741 = smul.addr %s31, 16
          %s742 = scalar_lea.hbm %s5, %s741
          %s744 = sshll.u32 %s730, 4
          %s745 = int_to_ptr.vmem [resolvable:$true] %s744
          %747 = dma.vmem_to_hbm [thread:$0]  %s745, 16, %s742, %s728
        $region56: #{tpu_custom_call.1} parent=39 // pred_fallthru
          _
        // Predicated region
        $region57: #{tpu_custom_call.1} parent=39 // pred_check
          %p748 = pneg %p195
        $region58: #{tpu_custom_call.1} parent=39 // pred_check_branch
          %750 = sbr.rel (%p748) target = $region60
        $region59: #{tpu_custom_call.1} parent=39 // pred_region
          %s752 = ssub.s32 16, 16
          %753 = vsyncadd %s732, %s752
          %s754 = smul.addr %s31, 16
          %s755 = scalar_lea.hbm %s6, %s754
          %s757 = sshll.u32 %s734, 4
          %s758 = int_to_ptr.vmem [resolvable:$true] %s757
          %760 = dma.vmem_to_hbm [thread:$0]  %s758, 16, %s755, %s732
        $region60: #{tpu_custom_call.1} parent=39 // pred_fallthru
          _
      $region40: #{tpu_custom_call.1} parent=5 // pred_fallthru
        _
      %p761 = scmp.le.s32.totalorder 2, %s22
      // Predicated region
      $region61: #{tpu_custom_call.1} parent=5 // pred_check
        %p762 = pneg %p761
      $region62: #{tpu_custom_call.1} parent=5 // pred_check_branch
        %764 = sbr.rel (%p762) target = $region64
      $region63: #{tpu_custom_call.1} parent=5 // pred_region
        %s765 = ssub.s32 %s22, 2
        // Predicated region
        $region65: #{tpu_custom_call.1} parent=63 // pred_check
          %p766 = pneg %p175
        $region66: #{tpu_custom_call.1} parent=63 // pred_check_branch
          %768 = sbr.rel (%p766) target = $region68
        $region67: #{tpu_custom_call.1} parent=63 // pred_region
          %s769 = sand.u32 %s160, 1
          %s770 = scalar_lea.sflag [#allocation6], %s769
          %s771 = sand.u32 %s160, 1
          %s772 = scalar_lea.vmem [#allocation7], %s771
          %773 = dma.done %s770, 16
        $region68: #{tpu_custom_call.1} parent=63 // pred_fallthru
          _
        // Predicated region
        $region69: #{tpu_custom_call.1} parent=63 // pred_check
          %p774 = pneg %p201
        $region70: #{tpu_custom_call.1} parent=63 // pred_check_branch
          %776 = sbr.rel (%p774) target = $region72
        $region71: #{tpu_custom_call.1} parent=63 // pred_region
          %s777 = sand.u32 %s186, 1
          %s778 = scalar_lea.sflag [#allocation9], %s777
          %s779 = sand.u32 %s186, 1
          %s780 = scalar_lea.vmem [#allocation8], %s779
          %781 = dma.done %s778, 16
        $region72: #{tpu_custom_call.1} parent=63 // pred_fallthru
          _
      $region64: #{tpu_custom_call.1} parent=5 // pred_fallthru
        _
    $region6: #{tpu_custom_call.1} parent=1 // loop_footer
      %s26 = sadd.s32 1, %s22
    $region7: #{tpu_custom_call.1} parent=1 // loop_footer_branch
      %21 = sbr.rel target = $region3
    $region8: #{tpu_custom_call.1} parent=1 // loop_exit
      _
    %782 = vsyncpa [#allocation5], 1
    %s783 = scalar_lea.sflag [#allocation5], 1
    %784 = vsyncpa %s783, 1
    %785 = vsyncpa [#allocation6], 1
    %s786 = scalar_lea.sflag [#allocation6], 1
    %787 = vsyncpa %s786, 1
    %788 = vsyncpa [#allocation9], 1
    %s789 = scalar_lea.sflag [#allocation9], 1
    %790 = vsyncpa %s789, 1

</llo_original>
